<compile_context>
chip_gen: v7x
topology: tpu7x:2x2x1
jax: 0.10.0
libtpu: 0.0.40
codegen_flags: <defaults>
</compile_context>

<pallas_src>
import jax
import jax.numpy as jnp
from jax.experimental import pallas as pl
from jax.experimental.pallas import tpu as pltpu


def _round_up(x, m):
    return ((x + m - 1) // m) * m


def mf_tile_kernel(ue_ref, ie_ref, bias_ref, out_ref):
    # ue_ref, ie_ref: (TB, D) gathered embedding rows for this batch tile.
    # bias_ref, out_ref: (TB, 1).
    u = ue_ref[...].astype(jnp.float32)
    v = ie_ref[...].astype(jnp.float32)
    out_ref[...] = jnp.sum(u * v, axis=1, keepdims=True) + bias_ref[...]


def matrix_factorization_forward(user_indices, item_indices, params):
    ue = params["user_embedding"]      # (U, D)  -- used in native dtype, no table astype
    ie = params["item_embedding"]      # (I, D)
    ub = params["user_bias"]           # (U, 1)
    ib = params["item_bias"]           # (I, 1)
    gb = params["global_bias"]         # (1,)

    B = user_indices.shape[0]
    D = ue.shape[1]
    D_pad = _round_up(D, 128)          # lane-padded row width inside VMEM
    itemsize = jnp.dtype(ue.dtype).itemsize

    # --- Batch-tile sizing: target ~2 MiB of embedding data per input per grid
    # step; adaptive so small/medium batches run as one minimally-padded step.
    target_block_bytes = 2 * 1024 * 1024
    tb_max = max(128, min(8192, (target_block_bytes // (4 * D_pad)) // 128 * 128))
    num_tiles = -(-B // tb_max)
    TB = _round_up(-(-B // num_tiles), 128)
    B_pad = num_tiles * TB
    pad = B_pad - B

    # --- Pad the cheap int32 indices (NOT the gathered f32 slabs). Index 0 is a
    # valid row; padded lanes are sliced off after the kernel.
    if pad:
        user_idx = jnp.pad(user_indices, (0, pad))
        item_idx = jnp.pad(item_indices, (0, pad))
    else:
        user_idx = user_indices
        item_idx = item_indices

    # Row gathers stay in XLA (rows are only D*itemsize bytes each); the kernel
    # consumes the gathered (B_pad, D) slabs directly with batch on the sublane
    # axis, so no standalone transpose / relayout pass through HBM.
    # TODO(synk): for large rows (D >= ~256), move the gather in-kernel via
    # PrefetchScalarGridSpec(num_scalar_prefetch=2) + manual make_async_copy
    # double-buffering so embedding rows are read from HBM exactly once.
    ue_g = jnp.take(ue, user_idx, axis=0)                        # (B_pad, D)
    ie_g = jnp.take(ie, item_idx, axis=0)                        # (B_pad, D)
    bias = (jnp.take(ub[:, 0], user_idx).astype(jnp.float32)
            + jnp.take(ib[:, 0], item_idx).astype(jnp.float32)
            + gb.astype(jnp.float32)[0])[:, None]                # (B_pad, 1)

    # --- VMEM budget: 2 embedding inputs + bias + output, double-buffered;
    # (TB, 1) blocks are lane-padded to 128 inside VMEM.
    block_bytes = TB * D_pad * itemsize
    narrow_bytes = TB * 128 * 4
    vmem_need = 2 * 2 * block_bytes + 2 * 2 * narrow_bytes
    vmem_limit = int(min(48 * 1024 * 1024, max(32 * 1024 * 1024, 2 * vmem_need)))

    # On v7x, actually split the batch-tile axis across the two TensorCores.
    try:
        is_v7 = "v7" in jax.devices()[0].device_kind.lower()
    except Exception:
        is_v7 = False
    if is_v7 and num_tiles >= 2:
        dim_sem = (pltpu.CORE_PARALLEL,)
    else:
        dim_sem = ("parallel",)

    # NOTE: pipeline_mode=pl.Buffered(3) on the two embedding BlockSpecs is a
    # possible small additional win for very large batches; left at default depth.
    out = pl.pallas_call(
        mf_tile_kernel,
        out_shape=jax.ShapeDtypeStruct((B_pad, 1), jnp.float32),
        grid_spec=pl.GridSpec(
            grid=(num_tiles,),
            in_specs=[
                pl.BlockSpec((TB, D), lambda i: (i, 0)),   # user embedding rows
                pl.BlockSpec((TB, D), lambda i: (i, 0)),   # item embedding rows
                pl.BlockSpec((TB, 1), lambda i: (i, 0)),   # folded biases
            ],
            out_specs=pl.BlockSpec((TB, 1), lambda i: (i, 0)),
        ),
        compiler_params=pltpu.CompilerParams(
            dimension_semantics=dim_sem,
            vmem_limit_bytes=vmem_limit),
        cost_estimate=pl.CostEstimate(
            flops=2 * B_pad * D,
            transcendentals=0,
            bytes_accessed=2 * B_pad * D * itemsize + 2 * B_pad * 4),
    )(ue_g, ie_g, bias)

    return out[:B, 0]    # (B,), matches PyTorch: dot + squeezed biases


def init_params(key, num_users, num_items, embedding_dim):
    k1, k2, k3, k4 = jax.random.split(key, 4)
    return {
        # nn.init.normal_(std=0.01) for embeddings
        "user_embedding": 0.01 * jax.random.normal(k1, (num_users, embedding_dim), jnp.float32),
        "item_embedding": 0.01 * jax.random.normal(k2, (num_items, embedding_dim), jnp.float32),
        # nn.Embedding default init ~ N(0, 1) for bias tables
        "user_bias": jax.random.normal(k3, (num_users, 1), jnp.float32),
        "item_bias": jax.random.normal(k4, (num_items, 1), jnp.float32),
        "global_bias": jnp.zeros((1,), jnp.float32),
    }


def reference_forward(user_indices, item_indices, params):
    ue = jnp.take(params["user_embedding"], user_indices, axis=0)
    ie = jnp.take(params["item_embedding"], item_indices, axis=0)
    dot = jnp.sum(ue * ie, axis=1)
    bias = (jnp.take(params["user_bias"], user_indices, axis=0)[:, 0]
            + jnp.take(params["item_bias"], item_indices, axis=0)[:, 0]
            + params["global_bias"])
    return dot + bias


if __name__ == "__main__":
    num_users, num_items, embedding_dim = 64, 48, 100
    key = jax.random.PRNGKey(0)
    kp, ku, ki, ku2, ki2 = jax.random.split(key, 5)
    params = init_params(kp, num_users, num_items, embedding_dim)

    # Small batch (single tile, tail padding via padded indices).
    batch = 8
    user_indices = jax.random.randint(ku, (batch,), 0, num_users, dtype=jnp.int32)
    item_indices = jax.random.randint(ki, (batch,), 0, num_items, dtype=jnp.int32)

    out = matrix_factorization_forward(user_indices, item_indices, params)
    out = jax.block_until_ready(out)
    ref = reference_forward(user_indices, item_indices, params)
    assert out.shape == (batch,)
    assert jnp.allclose(out, ref, atol=1e-5, rtol=1e-5), (out, ref)

    # Medium batch (ragged, non-128 size) to exercise the adaptive tile path.
    batch2 = 300
    user_indices2 = jax.random.randint(ku2, (batch2,), 0, num_users, dtype=jnp.int32)
    item_indices2 = jax.random.randint(ki2, (batch2,), 0, num_items, dtype=jnp.int32)

    out2 = matrix_factorization_forward(user_indices2, item_indices2, params)
    out2 = jax.block_until_ready(out2)
    ref2 = reference_forward(user_indices2, item_indices2, params)
    assert out2.shape == (batch2,)
    assert jnp.allclose(out2, ref2, atol=1e-5, rtol=1e-5), (out2, ref2)

    print("KERNEL_OK")
</pallas_src>

<mosaic_0001>
module attributes {stable_mosaic.version = 11 : i64} {
  func.func @mf_tile_kernel(%arg0: i32, %arg1: memref<128x100xf32, #tpu.memory_space<vmem>>, %arg2: memref<128x100xf32, #tpu.memory_space<vmem>>, %arg3: memref<128x1xf32, #tpu.memory_space<vmem>>, %arg4: memref<128x1xf32, #tpu.memory_space<vmem>>) attributes {dimension_semantics = [#tpu.dimension_semantics<parallel>], iteration_bounds = array<i64: 1>, scalar_prefetch = 0 : i64, scratch_operands = 0 : i64, tpu.core_type = #tpu.core_type<tc>, window_params = [{transform_indices = @transform_0, window_bounds = array<i64: 128, 100>}, {transform_indices = @transform_1, window_bounds = array<i64: 128, 100>}, {transform_indices = @transform_2, window_bounds = array<i64: 128, 1>}, {transform_indices = @transform_3, window_bounds = array<i64: 128, 1>}]} {
    %c0 = arith.constant 0 : index
    %c0_0 = arith.constant 0 : index
    %0 = vector.load %arg1[%c0, %c0_0] : memref<128x100xf32, #tpu.memory_space<vmem>>, vector<128x100xf32>
    %c0_1 = arith.constant 0 : index
    %c0_2 = arith.constant 0 : index
    %1 = vector.load %arg2[%c0_1, %c0_2] : memref<128x100xf32, #tpu.memory_space<vmem>>, vector<128x100xf32>
    %2 = arith.mulf %0, %1 : vector<128x100xf32>
    %cst = arith.constant dense<0.000000e+00> : vector<128xf32>
    %3 = vector.multi_reduction <add>, %2, %cst [1] : vector<128x100xf32> to vector<128xf32>
    %4 = vector.shape_cast %3 : vector<128xf32> to vector<128x1xf32>
    %c0_3 = arith.constant 0 : index
    %c0_4 = arith.constant 0 : index
    %5 = vector.load %arg3[%c0_3, %c0_4] : memref<128x1xf32, #tpu.memory_space<vmem>>, vector<128x1xf32>
    %6 = arith.addf %4, %5 : vector<128x1xf32>
    %c0_5 = arith.constant 0 : index
    %c0_6 = arith.constant 0 : index
    %7 = vector.load %arg4[%c0_5, %c0_6] : memref<128x1xf32, #tpu.memory_space<vmem>>, vector<128x1xf32>
    tpu.vector_store %arg4[%c0_5, %c0_6], %6 {strides = array<i32>} : memref<128x1xf32, #tpu.memory_space<vmem>>, vector<128x1xf32>,
    return
  }
  func.func @transform_0(%arg0: i32) -> (i32, i32) {
    %c0_i32 = arith.constant 0 : i32
    %c0_i32_0 = arith.constant 0 : i32
    return %arg0, %c0_i32 : i32, i32
  }
  func.func @transform_1(%arg0: i32) -> (i32, i32) {
    %c0_i32 = arith.constant 0 : i32
    %c0_i32_0 = arith.constant 0 : i32
    return %arg0, %c0_i32 : i32, i32
  }
  func.func @transform_2(%arg0: i32) -> (i32, i32) {
    %c0_i32 = arith.constant 0 : i32
    %c0_i32_0 = arith.constant 0 : i32
    return %arg0, %c0_i32 : i32, i32
  }
  func.func @transform_3(%arg0: i32) -> (i32, i32) {
    %c0_i32 = arith.constant 0 : i32
    %c0_i32_0 = arith.constant 0 : i32
    return %arg0, %c0_i32 : i32, i32
  }
}

</mosaic_0001>

<llo_original>
// kernel: tpu_custom_call.1
$region0: #{tpu_custom_call.1}
  #allocation0 [shape = 'u32[]', space=smem, size = 0x4, offset = 0x4, fixed_abs, tag = 'smem constant byte address 0x4 - core index']
  #allocation1 [shape = 'u32[144,128]{1,0:T(1,128)}', space=vmem, size = 0x12000, scoped, tag = 'internal scratch']
  %s0 = inlined_call_operand.vmem [shape: f32[128,100], index: 0, kind: input, shape index: {}]
  %s1 = inlined_call_operand.vmem [shape: f32[128,100], index: 1, kind: input, shape index: {}]
  %s2 = inlined_call_operand.vmem [shape: f32[128,1], index: 2, kind: input, shape index: {}]
  %s3 = inlined_call_operand.vmem [shape: f32[128,1], index: 3, kind: output, shape index: {}]
  %s4 = sld [smem:[#allocation0]]
  $region22: #{tpu_custom_call.1} parent=0
    _
  %s6 = ssub.s32 1, %s4
  %s7 = scalar_select 0, %s6, %s4
  // Predicated region
  $region2: #{tpu_custom_call.1} parent=0 // pred_check
    _
  $region3: #{tpu_custom_call.1} parent=0 // pred_check_branch
    %9 = sbr.rel (0) target = $region5
  $region4: #{tpu_custom_call.1} parent=0 // pred_region
    _
  $region5: #{tpu_custom_call.1} parent=0 // pred_fallthru
    _
  // Predicated region
  $region6: #{tpu_custom_call.1} parent=0 // pred_check
    _
  $region7: #{tpu_custom_call.1} parent=0 // pred_check_branch
    %11 = sbr.rel (0) target = $region9
  $region8: #{tpu_custom_call.1} parent=0 // pred_region
    _
  $region9: #{tpu_custom_call.1} parent=0 // pred_fallthru
    _
  // Predicated region
  $region10: #{tpu_custom_call.1} parent=0 // pred_check
    _
  $region11: #{tpu_custom_call.1} parent=0 // pred_check_branch
    %13 = sbr.rel (0) target = $region13
  $region12: #{tpu_custom_call.1} parent=0 // pred_region
    _
  $region13: #{tpu_custom_call.1} parent=0 // pred_fallthru
    _
  %v14 = vld [vmem:[%s0] sm:$0xff]
  %v15 = vld [vmem:[%s0 + $0x8] sm:$0xff]
  %v16 = vld [vmem:[%s0 + $0x10] sm:$0xff]
  %v17 = vld [vmem:[%s0 + $0x18] sm:$0xff]
  %v18 = vld [vmem:[%s0 + $0x20] sm:$0xff]
  %v19 = vld [vmem:[%s0 + $0x28] sm:$0xff]
  %v20 = vld [vmem:[%s0 + $0x30] sm:$0xff]
  %v21 = vld [vmem:[%s0 + $0x38] sm:$0xff]
  %v22 = vld [vmem:[%s0 + $0x40] sm:$0xff]
  %v23 = vld [vmem:[%s0 + $0x48] sm:$0xff]
  %v24 = vld [vmem:[%s0 + $0x50] sm:$0xff]
  %v25 = vld [vmem:[%s0 + $0x58] sm:$0xff]
  %v26 = vld [vmem:[%s0 + $0x60] sm:$0xff]
  %v27 = vld [vmem:[%s0 + $0x68] sm:$0xff]
  %v28 = vld [vmem:[%s0 + $0x70] sm:$0xff]
  %v29 = vld [vmem:[%s0 + $0x78] sm:$0xff]
  %v30 = vld [vmem:[%s1] sm:$0xff]
  %v31 = vld [vmem:[%s1 + $0x8] sm:$0xff]
  %v32 = vld [vmem:[%s1 + $0x10] sm:$0xff]
  %v33 = vld [vmem:[%s1 + $0x18] sm:$0xff]
  %v34 = vld [vmem:[%s1 + $0x20] sm:$0xff]
  %v35 = vld [vmem:[%s1 + $0x28] sm:$0xff]
  %v36 = vld [vmem:[%s1 + $0x30] sm:$0xff]
  %v37 = vld [vmem:[%s1 + $0x38] sm:$0xff]
  %v38 = vld [vmem:[%s1 + $0x40] sm:$0xff]
  %v39 = vld [vmem:[%s1 + $0x48] sm:$0xff]
  %v40 = vld [vmem:[%s1 + $0x50] sm:$0xff]
  %v41 = vld [vmem:[%s1 + $0x58] sm:$0xff]
  %v42 = vld [vmem:[%s1 + $0x60] sm:$0xff]
  %v43 = vld [vmem:[%s1 + $0x68] sm:$0xff]
  %v44 = vld [vmem:[%s1 + $0x70] sm:$0xff]
  %v45 = vld [vmem:[%s1 + $0x78] sm:$0xff]
  %v46 = vmul.f32 %v14, %v30
  %v47 = vmul.f32 %v15, %v31
  %v48 = vmul.f32 %v16, %v32
  %v49 = vmul.f32 %v17, %v33
  %v50 = vmul.f32 %v18, %v34
  %v51 = vmul.f32 %v19, %v35
  %v52 = vmul.f32 %v20, %v36
  %v53 = vmul.f32 %v21, %v37
  %v54 = vmul.f32 %v22, %v38
  %v55 = vmul.f32 %v23, %v39
  %v56 = vmul.f32 %v24, %v40
  %v57 = vmul.f32 %v25, %v41
  %v58 = vmul.f32 %v26, %v42
  %v59 = vmul.f32 %v27, %v43
  %v60 = vmul.f32 %v28, %v44
  %v61 = vmul.f32 %v29, %v45
  %vm62 = vcmask 818176
  %v63 = vsel %vm62, %v46, 0.0
  %64 = vadd.xlane.f32.xlu0 %v63
  %v65 = vpop.xlane.xlu0 %64
  %v66 = vsel %vm62, %v47, 0.0
  %67 = vadd.xlane.f32.xlu0 %v66
  %v68 = vpop.xlane.xlu0 %67
  %v69 = vsel %vm62, %v48, 0.0
  %70 = vadd.xlane.f32.xlu0 %v69
  %v71 = vpop.xlane.xlu0 %70
  %v72 = vsel %vm62, %v49, 0.0
  %73 = vadd.xlane.f32.xlu0 %v72
  %v74 = vpop.xlane.xlu0 %73
  %v75 = vsel %vm62, %v50, 0.0
  %76 = vadd.xlane.f32.xlu0 %v75
  %v77 = vpop.xlane.xlu0 %76
  %v78 = vsel %vm62, %v51, 0.0
  %79 = vadd.xlane.f32.xlu0 %v78
  %v80 = vpop.xlane.xlu0 %79
  %v81 = vsel %vm62, %v52, 0.0
  %82 = vadd.xlane.f32.xlu0 %v81
  %v83 = vpop.xlane.xlu0 %82
  %v84 = vsel %vm62, %v53, 0.0
  %85 = vadd.xlane.f32.xlu0 %v84
  %v86 = vpop.xlane.xlu0 %85
  %v87 = vsel %vm62, %v54, 0.0
  %88 = vadd.xlane.f32.xlu0 %v87
  %v89 = vpop.xlane.xlu0 %88
  %v90 = vsel %vm62, %v55, 0.0
  %91 = vadd.xlane.f32.xlu0 %v90
  %v92 = vpop.xlane.xlu0 %91
  %v93 = vsel %vm62, %v56, 0.0
  %94 = vadd.xlane.f32.xlu0 %v93
  %v95 = vpop.xlane.xlu0 %94
  %v96 = vsel %vm62, %v57, 0.0
  %97 = vadd.xlane.f32.xlu0 %v96
  %v98 = vpop.xlane.xlu0 %97
  %v99 = vsel %vm62, %v58, 0.0
  %100 = vadd.xlane.f32.xlu0 %v99
  %v101 = vpop.xlane.xlu0 %100
  %v102 = vsel %vm62, %v59, 0.0
  %103 = vadd.xlane.f32.xlu0 %v102
  %v104 = vpop.xlane.xlu0 %103
  %v105 = vsel %vm62, %v60, 0.0
  %106 = vadd.xlane.f32.xlu0 %v105
  %v107 = vpop.xlane.xlu0 %106
  %v108 = vsel %vm62, %v61, 0.0
  %109 = vadd.xlane.f32.xlu0 %v108
  %v110 = vpop.xlane.xlu0 %109
  %v111 = vld [vmem:[%s2] sm:$0xff]
  %v112 = vld [vmem:[%s2 + $0x8] sm:$0xff]
  %v113 = vld [vmem:[%s2 + $0x10] sm:$0xff]
  %v114 = vld [vmem:[%s2 + $0x18] sm:$0xff]
  %v115 = vld [vmem:[%s2 + $0x20] sm:$0xff]
  %v116 = vld [vmem:[%s2 + $0x28] sm:$0xff]
  %v117 = vld [vmem:[%s2 + $0x30] sm:$0xff]
  %v118 = vld [vmem:[%s2 + $0x38] sm:$0xff]
  %v119 = vld [vmem:[%s2 + $0x40] sm:$0xff]
  %v120 = vld [vmem:[%s2 + $0x48] sm:$0xff]
  %v121 = vld [vmem:[%s2 + $0x50] sm:$0xff]
  %v122 = vld [vmem:[%s2 + $0x58] sm:$0xff]
  %v123 = vld [vmem:[%s2 + $0x60] sm:$0xff]
  %v124 = vld [vmem:[%s2 + $0x68] sm:$0xff]
  %v125 = vld [vmem:[%s2 + $0x70] sm:$0xff]
  %v126 = vld [vmem:[%s2 + $0x78] sm:$0xff]
  %v127 = vadd.f32 %v65, %v111
  %v128 = vadd.f32 %v68, %v112
  %v129 = vadd.f32 %v71, %v113
  %v130 = vadd.f32 %v74, %v114
  %v131 = vadd.f32 %v77, %v115
  %v132 = vadd.f32 %v80, %v116
  %v133 = vadd.f32 %v83, %v117
  %v134 = vadd.f32 %v86, %v118
  %v135 = vadd.f32 %v89, %v119
  %v136 = vadd.f32 %v92, %v120
  %v137 = vadd.f32 %v95, %v121
  %v138 = vadd.f32 %v98, %v122
  %v139 = vadd.f32 %v101, %v123
  %v140 = vadd.f32 %v104, %v124
  %v141 = vadd.f32 %v107, %v125
  %v142 = vadd.f32 %v110, %v126
  %vm143 = vcmask 7168
  %144 = vst.msk [vmem:[%s3] sm:$0xff] %vm143, %v127
  %145 = vst.msk [vmem:[%s3 + $0x8] sm:$0xff] %vm143, %v128
  %146 = vst.msk [vmem:[%s3 + $0x10] sm:$0xff] %vm143, %v129
  %147 = vst.msk [vmem:[%s3 + $0x18] sm:$0xff] %vm143, %v130
  %148 = vst.msk [vmem:[%s3 + $0x20] sm:$0xff] %vm143, %v131
  %149 = vst.msk [vmem:[%s3 + $0x28] sm:$0xff] %vm143, %v132
  %150 = vst.msk [vmem:[%s3 + $0x30] sm:$0xff] %vm143, %v133
  %151 = vst.msk [vmem:[%s3 + $0x38] sm:$0xff] %vm143, %v134
  %152 = vst.msk [vmem:[%s3 + $0x40] sm:$0xff] %vm143, %v135
  %153 = vst.msk [vmem:[%s3 + $0x48] sm:$0xff] %vm143, %v136
  %154 = vst.msk [vmem:[%s3 + $0x50] sm:$0xff] %vm143, %v137
  %155 = vst.msk [vmem:[%s3 + $0x58] sm:$0xff] %vm143, %v138
  %156 = vst.msk [vmem:[%s3 + $0x60] sm:$0xff] %vm143, %v139
  %157 = vst.msk [vmem:[%s3 + $0x68] sm:$0xff] %vm143, %v140
  %158 = vst.msk [vmem:[%s3 + $0x70] sm:$0xff] %vm143, %v141
  %159 = vst.msk [vmem:[%s3 + $0x78] sm:$0xff] %vm143, %v142
  // Predicated region
  $region14: #{tpu_custom_call.1} parent=0 // pred_check
    _
  $region15: #{tpu_custom_call.1} parent=0 // pred_check_branch
    %161 = sbr.rel (0) target = $region17
  $region16: #{tpu_custom_call.1} parent=0 // pred_region
    _
  $region17: #{tpu_custom_call.1} parent=0 // pred_fallthru
    _
  // Predicated region
  $region18: #{tpu_custom_call.1} parent=0 // pred_check
    _
  $region19: #{tpu_custom_call.1} parent=0 // pred_check_branch
    %163 = sbr.rel (0) target = $region21
  $region20: #{tpu_custom_call.1} parent=0 // pred_region
    _
  $region21: #{tpu_custom_call.1} parent=0 // pred_fallthru
    _

</llo_original>
